<compile_context>
chip_gen: v7x
topology: tpu7x:2x2x1
jax: 0.10.0
libtpu: 0.0.40
codegen_flags: <defaults>
</compile_context>

<pallas_src>
import functools
import math

import numpy as np
import jax
import jax.numpy as jnp
from jax.experimental import pallas as pl
from jax.experimental.pallas import tpu as pltpu


# ----------------------------------------------------------------------------
# Bicubic resampling weight matrices (PyTorch upsample_bicubic2d semantics:
# align_corners=False, cubic coefficient A = -0.75, replicated border).
# ----------------------------------------------------------------------------
@functools.lru_cache(maxsize=None)
def _bicubic_weight_matrix(in_size: int, out_size: int, A: float = -0.75) -> np.ndarray:
    if in_size == out_size:
        return np.eye(out_size, dtype=np.float32)

    def cubic1(t):  # |t| <= 1
        return ((A + 2.0) * t - (A + 3.0)) * t * t + 1.0

    def cubic2(t):  # 1 < |t| < 2
        return ((A * t - 5.0 * A) * t + 8.0 * A) * t - 4.0 * A

    scale = in_size / out_size
    i = np.arange(out_size, dtype=np.float64)
    coord = (i + 0.5) * scale - 0.5
    fl = np.floor(coord)
    t = coord - fl

    coeffs = [cubic2(t + 1.0), cubic1(t), cubic1(1.0 - t), cubic2(2.0 - t)]
    W = np.zeros((out_size, in_size), dtype=np.float64)
    rows = np.arange(out_size)
    for k, c in enumerate(coeffs):
        idx = np.clip(fl.astype(np.int64) - 1 + k, 0, in_size - 1)
        np.add.at(W, (rows, idx), c)
    # TODO(synk): for very large H/W exploit the 4-tap banded structure of W
    # (scalar-prefetch offset table, skip all-zero K tiles) instead of the dense
    # contraction.
    return W.astype(np.float32)


# ----------------------------------------------------------------------------
# Kernel: BLK (b, c) planes per grid step.
#   x_ref   : (blk, H, W)       bf16 input planes
#   wwt_ref : (W, TW)           bf16 column-resampling matrix (already transposed)
#   wh_ref  : (TH, H)           bf16 row-resampling matrix
#   o_ref   : (TH, blk*TW)      lane-major output block [th, p*TW + w]
#   m_ref   : (H, blk*TW)  bf16 VMEM scratch (lane-major intermediate)
# ----------------------------------------------------------------------------
def _interp_kernel(x_ref, wwt_ref, wh_ref, o_ref, m_ref, *, width_id, height_id):
    blk, H, W = x_ref.shape
    TW = wwt_ref.shape[1]

    x = x_ref[...]                                       # (blk, H, W) bf16

    # Width resample as ONE 2-D MXU matmul: M = blk*H, K = W, N = TW (f32 acc).
    if width_id:
        t1 = x.reshape(blk * H, W)                       # identity: W == TW
    else:
        t1 = jnp.dot(x.reshape(blk * H, W), wwt_ref[...],
                     preferred_element_type=jnp.float32)  # (blk*H, TW) f32

    if height_id:
        # Height weights are identity: scatter the per-plane tiles straight into
        # the lane-dense output block (cheap masked VMEM stores; no extra matmul,
        # no bf16 round-trip of t1).
        for p in range(blk):
            o_ref[:, p * TW:(p + 1) * TW] = t1[p * H:(p + 1) * H, :].astype(o_ref.dtype)
    else:
        # Relayout plane-major (blk*H, TW) -> lane-major (H, blk*TW) via VMEM
        # scratch, then the height resample is ONE wide 2-D MXU matmul
        # (M = TH, K = H, N = blk*TW) whose result stores unmasked & lane-dense.
        t1 = t1.astype(m_ref.dtype)
        for p in range(blk):
            m_ref[:, p * TW:(p + 1) * TW] = t1[p * H:(p + 1) * H, :]
        o_ref[...] = jnp.dot(wh_ref[...], m_ref[...],
                             preferred_element_type=jnp.float32).astype(o_ref.dtype)


# ----------------------------------------------------------------------------
# Block-size selection with tile-padding-aware VMEM accounting.
# ----------------------------------------------------------------------------
def _cdiv(a, b):
    return -(-a // b)


def _ceil_to(v, m):
    return -(-v // m) * m


def _padded2d_bytes(rows, cols, itemsize):
    """VMEM bytes of a 2-D buffer including (8,128) f32 / (16,128) bf16 tiling."""
    sublane = 8 * (4 // itemsize)
    return _ceil_to(max(rows, 1), sublane) * _ceil_to(max(cols, 1), 128) * itemsize


def _tpu_vmem_info():
    """Returns (per-core VMEM capacity bytes, #TensorCores to keep fed)."""
    cap = 64 * 1024 * 1024                  # conservative default (v7x per-TC VMEM)
    try:
        info = pltpu.get_tpu_info()
        c = int(getattr(info, "vmem_capacity_bytes", 0) or 0)
        if c > 0:
            cap = c
    except Exception:
        pass
    # v7x: 64 MiB per TensorCore, 2 TCs/chip.  v5e/v6e: 128 MiB, 1 TC.
    num_cores = 2 if cap <= 64 * 1024 * 1024 else 1
    return cap, num_cores


def _choose_block_planes(bc, H, W, TH, TW, out_itemsize, vmem_budget, num_cores):
    """Pick planes per grid step: blk == bc (full, always layout-legal) or a
    multiple of `unit` so the output block's last dim blk*TW is 128-aligned."""
    unit = 128 // math.gcd(TW, 128)

    def footprint(blk):
        b = 0
        b += 2 * blk * _padded2d_bytes(H, W, 2)                   # x blocks (double-buffered, bf16)
        b += 2 * _padded2d_bytes(TH, blk * TW, out_itemsize)      # output blocks (double-buffered)
        b += 2 * (_padded2d_bytes(W, TW, 2) + _padded2d_bytes(TH, H, 2))   # weights
        b += _padded2d_bytes(blk * H, TW, 4)                      # width-matmul f32 result
        b += _padded2d_bytes(blk * H, TW, 2)                      # bf16 copy of it
        b += _padded2d_bytes(H, blk * TW, 2)                      # lane-major scratch
        b += _padded2d_bytes(TH, blk * TW, 4)                     # height-matmul f32 result
        return b

    cands = {bc}
    m = unit
    while m < min(bc, 257):
        cands.add(m)
        m += unit
    cands = sorted(cands)

    fitting = [c for c in cands
               if footprint(c) <= vmem_budget and c * TW <= 2048 and c <= 256]
    if not fitting:
        blk = cands[0]                      # floor; vmem_limit is raised accordingly
    else:
        blk = max(fitting)
        min_steps = 2 * num_cores           # DMA pipelining + keep both TCs busy (v7x)
        if _cdiv(bc, blk) < min_steps:
            smaller = [c for c in fitting if _cdiv(bc, c) >= min_steps]
            if smaller:
                blk = max(smaller)
    return blk, footprint(blk)


# ----------------------------------------------------------------------------
# Wrapper: (bc, H, W) bf16 planes -> (TH, bc*TW) lane-major scaled output.
# ----------------------------------------------------------------------------
def _interpolate_bicubic_lane_major(x_bf, target_h, target_w, out_dtype):
    bc, H, W = x_bf.shape
    TH, TW = target_h, target_w
    width_id = (W == TW)
    height_id = (H == TH)

    wh = jnp.asarray(_bicubic_weight_matrix(H, TH), dtype=jnp.bfloat16)      # (TH, H)
    wwt = jnp.asarray(_bicubic_weight_matrix(W, TW).T, dtype=jnp.bfloat16)   # (W, TW)

    cap, num_cores = _tpu_vmem_info()
    budget = max(6 << 20, int(cap * 0.35))
    blk, est = _choose_block_planes(bc, H, W, TH, TW,
                                    np.dtype(out_dtype).itemsize, budget, num_cores)
    grid = (_cdiv(bc, blk),)
    vmem_limit = int(min(cap * 0.9, max(32 << 20, est * 1.5)))

    kernel = functools.partial(_interp_kernel, width_id=width_id, height_id=height_id)
    # TODO(synk): consider pipeline_mode=pl.Buffered(3) on the x spec if profiling
    # shows exposed input DMA on large blocks.
    out = pl.pallas_call(
        kernel,
        out_shape=jax.ShapeDtypeStruct((TH, bc * TW), out_dtype),
        grid=grid,
        in_specs=[
            pl.BlockSpec((blk, H, W), lambda i: (i, 0, 0)),      # streamed planes
            pl.BlockSpec((W, TW), lambda i: (0, 0)),             # grid-invariant weights
            pl.BlockSpec((TH, H), lambda i: (0, 0)),
        ],
        out_specs=pl.BlockSpec((TH, blk * TW), lambda i: (0, i)),  # lane-dense output
        scratch_shapes=[pltpu.VMEM((H, blk * TW), jnp.bfloat16)],
        compiler_params=pltpu.CompilerParams(
            dimension_semantics=("parallel",),
            vmem_limit_bytes=vmem_limit,
        ),
    )(x_bf, wwt, wh)
    return out


# ----------------------------------------------------------------------------
# Module port
# ----------------------------------------------------------------------------
class InterpolateSplitBlock:
    """JAX/Pallas port of the PyTorch InterpolateSplitBlock (no parameters)."""

    def __init__(self, num_patches, fm_input_size, input_size):
        self.num_patches = num_patches          # list of (n_h, n_w)
        self.fm_input_size = fm_input_size      # patch side p
        self.input_size = input_size            # (H, W)

    def _split_to_patches(self, x, n_h, n_w):
        # 'B C (n_h p) (n_w p) -> B (n_h n_w) C p p'  (identity-scale path)
        B, C, H, W = x.shape
        p = self.fm_input_size
        x = x.reshape(B, C, n_h, p, n_w, p)
        x = jnp.transpose(x, (0, 2, 4, 1, 3, 5))
        return x.reshape(B, n_h * n_w, C, p, p)

    def _patches_from_lane_major(self, o2d, B, C, n_h, n_w):
        # Kernel output o2d: (TH, B*C*TW), element [nh*p+i, (b*C+c)*TW + nw*p+j].
        # One transpose pass produces the patch layout directly; the (B,C,TH,TW)
        # intermediate of the torch code is never materialized in HBM.
        p = self.fm_input_size
        t = o2d.reshape(n_h, p, B, C, n_w, p)
        t = jnp.transpose(t, (2, 0, 4, 3, 1, 5))     # (B, n_h, n_w, C, p, p)
        return t.reshape(B, n_h * n_w, C, p, p)

    def __call__(self, x):
        B, C, H, W = x.shape
        scales = [(n_h, n_w, n_h * self.fm_input_size, n_w * self.fm_input_size)
                  for n_h, n_w in self.num_patches]
        any_interp = any((self.input_size[0], self.input_size[1]) != (th, tw)
                         for _, _, th, tw in scales)
        x_bf = None
        if any_interp:
            # One f32->bf16 HBM pass per forward, shared by every interpolated scale.
            x_bf = x.astype(jnp.bfloat16).reshape(B * C, H, W)

        all_patches = []
        for n_h, n_w, th, tw in scales:
            if (self.input_size[0], self.input_size[1]) != (th, tw):
                o2d = _interpolate_bicubic_lane_major(x_bf, th, tw, x.dtype)
                patches = self._patches_from_lane_major(o2d, B, C, n_h, n_w)
            else:
                patches = self._split_to_patches(x, n_h, n_w)   # exact pass-through
            all_patches.append(patches)

        xcat = jnp.concatenate(all_patches, axis=1)   # (B, n_p_total, C, p, p)
        Bq, n_p, Cq, ph, pw = xcat.shape
        return xcat.reshape(Bq * n_p, Cq, ph, pw)


# ----------------------------------------------------------------------------
# Reference (same precision: bf16 operands, f32 accumulation) and demo
# ----------------------------------------------------------------------------
def _ref_bicubic(x, th, tw):
    B, C, H, W = x.shape
    whb = jnp.asarray(_bicubic_weight_matrix(H, th), jnp.float32
                      ).astype(jnp.bfloat16).astype(jnp.float32)
    wwb = jnp.asarray(_bicubic_weight_matrix(W, tw), jnp.float32
                      ).astype(jnp.bfloat16).astype(jnp.float32)
    xb = x.astype(jnp.bfloat16).astype(jnp.float32)
    t1 = jnp.einsum('bchw,vw->bchv', xb, wwb)
    t1 = t1.astype(jnp.bfloat16).astype(jnp.float32)
    return jnp.einsum('th,bchv->bctv', whb, t1).astype(x.dtype)


if __name__ == "__main__":
    key = jax.random.PRNGKey(0)
    B, C, H, W = 2, 4, 16, 16
    fm = 8
    num_patches = [(1, 1), (2, 2)]   # (1,1): bicubic 16x16 -> 8x8 ; (2,2): identity
    x = jax.random.normal(key, (B, C, H, W), dtype=jnp.float32)

    block = InterpolateSplitBlock(num_patches, fm, (H, W))
    out = jax.block_until_ready(block(x))

    n_total = sum(nh * nw for nh, nw in num_patches)      # 1 + 4 = 5
    assert out.shape == (B * n_total, C, fm, fm), out.shape
    assert out.dtype == jnp.float32

    # Numerical check of the Pallas bicubic path vs a same-precision jnp reference.
    o2d = jax.block_until_ready(_interpolate_bicubic_lane_major(
        x.astype(jnp.bfloat16).reshape(B * C, H, W), fm, fm, x.dtype))
    got = block._patches_from_lane_major(o2d, B, C, 1, 1)[:, 0]    # (B, C, fm, fm)
    want = _ref_bicubic(x, fm, fm)
    np.testing.assert_allclose(np.asarray(got), np.asarray(want), rtol=2e-2, atol=2e-2)

    print("KERNEL_OK")
</pallas_src>

<mosaic_0001>
module attributes {stable_mosaic.version = 11 : i64} {
  func.func @_interp_kernel(%arg0: i32, %arg1: memref<8x16x16xbf16, #tpu.memory_space<vmem>>, %arg2: memref<16x8xbf16, #tpu.memory_space<vmem>>, %arg3: memref<8x16xbf16, #tpu.memory_space<vmem>>, %arg4: memref<8x64xf32, #tpu.memory_space<vmem>>, %arg5: memref<16x64xbf16, #tpu.memory_space<vmem>>) attributes {dimension_semantics = [#tpu.dimension_semantics<parallel>], iteration_bounds = array<i64: 1>, scalar_prefetch = 0 : i64, scratch_operands = 1 : i64, tpu.core_type = #tpu.core_type<tc>, window_params = [{transform_indices = @transform_0, window_bounds = array<i64: 8, 16, 16>}, {pipeline_mode = #tpu.pipeline_mode<synchronous>, transform_indices = @transform_1, window_bounds = array<i64: 16, 8>}, {pipeline_mode = #tpu.pipeline_mode<synchronous>, transform_indices = @transform_2, window_bounds = array<i64: 8, 16>}, {transform_indices = @transform_3, window_bounds = array<i64: 8, 64>}]} {
    %c0 = arith.constant 0 : index
    %c0_0 = arith.constant 0 : index
    %c0_1 = arith.constant 0 : index
    %0 = vector.load %arg1[%c0, %c0_0, %c0_1] : memref<8x16x16xbf16, #tpu.memory_space<vmem>>, vector<8x16x16xbf16>
    %1 = vector.shape_cast %0 : vector<8x16x16xbf16> to vector<128x16xbf16>
    %c0_2 = arith.constant 0 : index
    %c0_3 = arith.constant 0 : index
    %2 = vector.load %arg2[%c0_2, %c0_3] : memref<16x8xbf16, #tpu.memory_space<vmem>>, vector<16x8xbf16>
    %cst = arith.constant dense<0.000000e+00> : vector<128x8xf32>
    %3 = tpu.matmul %1, %2, %cst {dimension_numbers = #tpu.dot_dimension_numbers<[1], [0], [0], [1], [0, 0, 1, 1], [], []>} : vector<128x16xbf16>, vector<16x8xbf16>, vector<128x8xf32> -> vector<128x8xf32>
    %4 = arith.truncf %3 : vector<128x8xf32> to vector<128x8xbf16>
    %5 = vector.extract_strided_slice %4 {offsets = [0, 0], sizes = [16, 8], strides = [1, 1]} : vector<128x8xbf16> to vector<16x8xbf16>
    %c0_4 = arith.constant 0 : index
    %c0_5 = arith.constant 0 : index
    %6 = vector.load %arg5[%c0_4, %c0_5] : memref<16x64xbf16, #tpu.memory_space<vmem>>, vector<16x8xbf16>
    tpu.vector_store %arg5[%c0_4, %c0_5], %5 {strides = array<i32>} : memref<16x64xbf16, #tpu.memory_space<vmem>>, vector<16x8xbf16>,
    %7 = vector.extract_strided_slice %4 {offsets = [16, 0], sizes = [16, 8], strides = [1, 1]} : vector<128x8xbf16> to vector<16x8xbf16>
    %c0_6 = arith.constant 0 : index
    %c8 = arith.constant 8 : index
    %8 = vector.load %arg5[%c0_6, %c8] : memref<16x64xbf16, #tpu.memory_space<vmem>>, vector<16x8xbf16>
    tpu.vector_store %arg5[%c0_6, %c8], %7 {strides = array<i32>} : memref<16x64xbf16, #tpu.memory_space<vmem>>, vector<16x8xbf16>,
    %9 = vector.extract_strided_slice %4 {offsets = [32, 0], sizes = [16, 8], strides = [1, 1]} : vector<128x8xbf16> to vector<16x8xbf16>
    %c0_7 = arith.constant 0 : index
    %c16 = arith.constant 16 : index
    %10 = vector.load %arg5[%c0_7, %c16] : memref<16x64xbf16, #tpu.memory_space<vmem>>, vector<16x8xbf16>
    tpu.vector_store %arg5[%c0_7, %c16], %9 {strides = array<i32>} : memref<16x64xbf16, #tpu.memory_space<vmem>>, vector<16x8xbf16>,
    %11 = vector.extract_strided_slice %4 {offsets = [48, 0], sizes = [16, 8], strides = [1, 1]} : vector<128x8xbf16> to vector<16x8xbf16>
    %c0_8 = arith.constant 0 : index
    %c24 = arith.constant 24 : index
    %12 = vector.load %arg5[%c0_8, %c24] : memref<16x64xbf16, #tpu.memory_space<vmem>>, vector<16x8xbf16>
    tpu.vector_store %arg5[%c0_8, %c24], %11 {strides = array<i32>} : memref<16x64xbf16, #tpu.memory_space<vmem>>, vector<16x8xbf16>,
    %13 = vector.extract_strided_slice %4 {offsets = [64, 0], sizes = [16, 8], strides = [1, 1]} : vector<128x8xbf16> to vector<16x8xbf16>
    %c0_9 = arith.constant 0 : index
    %c32 = arith.constant 32 : index
    %14 = vector.load %arg5[%c0_9, %c32] : memref<16x64xbf16, #tpu.memory_space<vmem>>, vector<16x8xbf16>
    tpu.vector_store %arg5[%c0_9, %c32], %13 {strides = array<i32>} : memref<16x64xbf16, #tpu.memory_space<vmem>>, vector<16x8xbf16>,
    %15 = vector.extract_strided_slice %4 {offsets = [80, 0], sizes = [16, 8], strides = [1, 1]} : vector<128x8xbf16> to vector<16x8xbf16>
    %c0_10 = arith.constant 0 : index
    %c40 = arith.constant 40 : index
    %16 = vector.load %arg5[%c0_10, %c40] : memref<16x64xbf16, #tpu.memory_space<vmem>>, vector<16x8xbf16>
    tpu.vector_store %arg5[%c0_10, %c40], %15 {strides = array<i32>} : memref<16x64xbf16, #tpu.memory_space<vmem>>, vector<16x8xbf16>,
    %17 = vector.extract_strided_slice %4 {offsets = [96, 0], sizes = [16, 8], strides = [1, 1]} : vector<128x8xbf16> to vector<16x8xbf16>
    %c0_11 = arith.constant 0 : index
    %c48 = arith.constant 48 : index
    %18 = vector.load %arg5[%c0_11, %c48] : memref<16x64xbf16, #tpu.memory_space<vmem>>, vector<16x8xbf16>
    tpu.vector_store %arg5[%c0_11, %c48], %17 {strides = array<i32>} : memref<16x64xbf16, #tpu.memory_space<vmem>>, vector<16x8xbf16>,
    %19 = vector.extract_strided_slice %4 {offsets = [112, 0], sizes = [16, 8], strides = [1, 1]} : vector<128x8xbf16> to vector<16x8xbf16>
    %c0_12 = arith.constant 0 : index
    %c56 = arith.constant 56 : index
    %20 = vector.load %arg5[%c0_12, %c56] : memref<16x64xbf16, #tpu.memory_space<vmem>>, vector<16x8xbf16>
    tpu.vector_store %arg5[%c0_12, %c56], %19 {strides = array<i32>} : memref<16x64xbf16, #tpu.memory_space<vmem>>, vector<16x8xbf16>,
    %c0_13 = arith.constant 0 : index
    %c0_14 = arith.constant 0 : index
    %21 = vector.load %arg3[%c0_13, %c0_14] : memref<8x16xbf16, #tpu.memory_space<vmem>>, vector<8x16xbf16>
    %c0_15 = arith.constant 0 : index
    %c0_16 = arith.constant 0 : index
    %22 = vector.load %arg5[%c0_15, %c0_16] : memref<16x64xbf16, #tpu.memory_space<vmem>>, vector<16x64xbf16>
    %cst_17 = arith.constant dense<0.000000e+00> : vector<8x64xf32>
    %23 = tpu.matmul %21, %22, %cst_17 {dimension_numbers = #tpu.dot_dimension_numbers<[1], [0], [0], [1], [0, 0, 1, 1], [], []>} : vector<8x16xbf16>, vector<16x64xbf16>, vector<8x64xf32> -> vector<8x64xf32>
    %c0_18 = arith.constant 0 : index
    %c0_19 = arith.constant 0 : index
    %24 = vector.load %arg4[%c0_18, %c0_19] : memref<8x64xf32, #tpu.memory_space<vmem>>, vector<8x64xf32>
    tpu.vector_store %arg4[%c0_18, %c0_19], %23 {strides = array<i32>} : memref<8x64xf32, #tpu.memory_space<vmem>>, vector<8x64xf32>,
    return
  }
  func.func @transform_0(%arg0: i32) -> (i32, i32, i32) {
    %c0_i32 = arith.constant 0 : i32
    %c0_i32_0 = arith.constant 0 : i32
    %c0_i32_1 = arith.constant 0 : i32
    return %arg0, %c0_i32, %c0_i32_0 : i32, i32, i32
  }
  func.func @transform_1(%arg0: i32) -> (i32, i32) {
    %c0_i32 = arith.constant 0 : i32
    %c0_i32_0 = arith.constant 0 : i32
    %c0_i32_1 = arith.constant 0 : i32
    return %c0_i32, %c0_i32_0 : i32, i32
  }
  func.func @transform_2(%arg0: i32) -> (i32, i32) {
    %c0_i32 = arith.constant 0 : i32
    %c0_i32_0 = arith.constant 0 : i32
    %c0_i32_1 = arith.constant 0 : i32
    return %c0_i32, %c0_i32_0 : i32, i32
  }
  func.func @transform_3(%arg0: i32) -> (i32, i32) {
    %c0_i32 = arith.constant 0 : i32
    %c0_i32_0 = arith.constant 0 : i32
    return %c0_i32, %arg0 : i32, i32
  }
}

</mosaic_0001>

<llo_original>
// kernel: tpu_custom_call.1
$region0: #{tpu_custom_call.1}
  #allocation0 [shape = 'u32[]', space=smem, size = 0x4, offset = 0x4, fixed_abs, tag = 'smem constant byte address 0x4 - core index']
  #allocation1 [shape = 'u32[144,128]{1,0:T(1,128)}', space=vmem, size = 0x12000, scoped, tag = 'internal scratch']
  #allocation2 [shape = 'bf16[16,64]{1,0:T(16,128)(2,1)}', space=vmem, size = 0x1000, scoped, tag = 'scratch operand']
  %s0 = inlined_call_operand.hbm [shape: bf16[8,16,16], index: 0, kind: input, shape index: {}]
  %s1 = inlined_call_operand.vmem [shape: bf16[16,8], index: 1, kind: input, shape index: {}]
  %s2 = inlined_call_operand.vmem [shape: bf16[8,16], index: 2, kind: input, shape index: {}]
  %s3 = inlined_call_operand.hbm [shape: f32[8,64], index: 3, kind: output, shape index: {}]
  %s4 = sld [smem:[#allocation0]]
  $region26: #{tpu_custom_call.1} parent=0
    _
  %s6 = ssub.s32 1, %s4
  %s7 = scalar_select 0, %s6, %s4
  $region1: #{tpu_custom_call.1} parent=0
    #allocation3 [shape = 'u8[32768]{0}', space=vmem, size = 0x8000, scoped, tag = 'input window, operand 0, single buffered']
    #allocation4 [shape = 's32[1]{0}', space=sflag, size = 0x4, scoped, tag = 'scoped memory for tpu_custom_call.1']
    #allocation5 [shape = 's32[1]{0}', space=sflag, size = 0x4, scoped, tag = 'scoped memory for tpu_custom_call.1']
    #allocation6 [shape = 'u8[4096]{0}', space=vmem, size = 0x1000, scoped, tag = 'output window, operand 0, single buffered']
    %8 = vsyncpa [#allocation4], 0
    %9 = vsyncpa [#allocation5], 0
    // Predicated region
    $region2: #{tpu_custom_call.1} parent=1 // pred_check
      _
    $region3: #{tpu_custom_call.1} parent=1 // pred_check_branch
      %11 = sbr.rel (0) target = $region5
    $region4: #{tpu_custom_call.1} parent=1 // pred_region
      %s13 = ssub.s32 1024, 1024
      %14 = vsyncadd [#allocation4], %s13
      %s15 = sshll.u32 [#allocation3], 4
      %s16 = int_to_ptr.vmem [resolvable:$true] %s15
      %21 = dma.hbm_to_vmem [thread:$0]  %s0, 1024, %s16, [#allocation4], 64, 64, 4
    $region5: #{tpu_custom_call.1} parent=1 // pred_fallthru
      _
    // Predicated region
    $region6: #{tpu_custom_call.1} parent=1 // pred_check
      _
    $region7: #{tpu_custom_call.1} parent=1 // pred_check_branch
      %23 = sbr.rel (0) target = $region9
    $region8: #{tpu_custom_call.1} parent=1 // pred_region
      _
    $region9: #{tpu_custom_call.1} parent=1 // pred_fallthru
      _
    // Predicated region
    $region10: #{tpu_custom_call.1} parent=1 // pred_check
      _
    $region11: #{tpu_custom_call.1} parent=1 // pred_check_branch
      %25 = sbr.rel (0) target = $region13
    $region12: #{tpu_custom_call.1} parent=1 // pred_region
      _
    $region13: #{tpu_custom_call.1} parent=1 // pred_fallthru
      _
    // Predicated region
    $region14: #{tpu_custom_call.1} parent=1 // pred_check
      _
    $region15: #{tpu_custom_call.1} parent=1 // pred_check_branch
      %27 = sbr.rel (0) target = $region17
    $region16: #{tpu_custom_call.1} parent=1 // pred_region
      %28 = dma.done [#allocation4], 1024
    $region17: #{tpu_custom_call.1} parent=1 // pred_fallthru
      _
    %v30 = vld [vmem:[#allocation3] sm:$0xf]
    %v31 = vld [vmem:[#allocation3 + $0x4] sm:$0xf]
    %v32 = vld [vmem:[#allocation3 + $0x8] sm:$0xf]
    %v33 = vld [vmem:[#allocation3 + $0xc] sm:$0xf]
    %v34 = vld [vmem:[#allocation3 + $0x10] sm:$0xf]
    %v35 = vld [vmem:[#allocation3 + $0x14] sm:$0xf]
    %v36 = vld [vmem:[#allocation3 + $0x18] sm:$0xf]
    %v37 = vld [vmem:[#allocation3 + $0x1c] sm:$0xf]
    %v38 = vld [vmem:[#allocation3 + $0x20] sm:$0xf]
    %v39 = vld [vmem:[#allocation3 + $0x24] sm:$0xf]
    %v40 = vld [vmem:[#allocation3 + $0x28] sm:$0xf]
    %v41 = vld [vmem:[#allocation3 + $0x2c] sm:$0xf]
    %v42 = vld [vmem:[#allocation3 + $0x30] sm:$0xf]
    %v43 = vld [vmem:[#allocation3 + $0x34] sm:$0xf]
    %v44 = vld [vmem:[#allocation3 + $0x38] sm:$0xf]
    %v45 = vld [vmem:[#allocation3 + $0x3c] sm:$0xf]
    %v46 = vld [vmem:[%s1] sm:$0xf]
    %v47 = vld [vmem:[%s1 + $0x4] sm:$0xf]
    %v64 = vunpack.c.l.b16 %v30
    %v65 = vunpack.c.l.b16 %v31
    %v66 = vunpack.c.l.b16 %v32
    %v67 = vunpack.c.l.b16 %v33
    %v68 = vunpack.c.l.b16 %v34
    %v69 = vunpack.c.l.b16 %v35
    %v70 = vunpack.c.l.b16 %v36
    %v71 = vunpack.c.l.b16 %v37
    %v72 = vunpack.c.l.b16 %v38
    %v73 = vunpack.c.l.b16 %v39
    %v74 = vunpack.c.l.b16 %v40
    %v75 = vunpack.c.l.b16 %v41
    %v76 = vunpack.c.l.b16 %v42
    %v77 = vunpack.c.l.b16 %v43
    %v78 = vunpack.c.l.b16 %v44
    %v79 = vunpack.c.l.b16 %v45
    %v80 = vpack.c.b16 %v65, %v64
    %v81 = vpack.c.b16 %v67, %v66
    %v82 = vpack.c.b16 %v69, %v68
    %v83 = vpack.c.b16 %v71, %v70
    %v84 = vpack.c.b16 %v73, %v72
    %v85 = vpack.c.b16 %v75, %v74
    %v86 = vpack.c.b16 %v77, %v76
    %v87 = vpack.c.b16 %v79, %v78
    %v90 = vunpack.c.l.b16 %v46
    %v91 = vunpack.c.l.b16 %v47
    %v92 = vpack.c.b16 %v91, %v90
    %vm94 = vcmask 130048
    %v96 = vsel %vm94, %v80, 0
    %v99 = vsel %vm94, %v81, 0
    %v102 = vsel %vm94, %v82, 0
    %v105 = vsel %vm94, %v83, 0
    %v108 = vsel %vm94, %v84, 0
    %v111 = vsel %vm94, %v85, 0
    %v114 = vsel %vm94, %v86, 0
    %v117 = vsel %vm94, %v87, 0
    %119 = vmatprep.subr.bf16.mxu0 0
    %120 = vmatpush1.bf16.msra.mxu0 %v92
    %121 = vmatprep.subr.bf16.mxu0 0
    %122 = vmatpush1.bf16.msra.mxu0 0
    %123 = vmatprep.subr.bf16.mxu0 0
    %124 = vmatpush1.bf16.msra.mxu0 0
    %125 = vmatprep.subr.bf16.mxu0 0
    %126 = vmatpush1.bf16.msra.mxu0 0
    %127 = vmatprep.subr.bf16.mxu0 0
    %128 = vmatpush1.bf16.msra.mxu0 0
    %129 = vmatprep.subr.bf16.mxu0 0
    %130 = vmatpush1.bf16.msra.mxu0 0
    %131 = vmatprep.subr.bf16.mxu0 0
    %132 = vmatpush1.bf16.msra.mxu0 0
    %133 = vmatprep.subr.bf16.mxu0 0
    %134 = vmatpush1.bf16.msra.mxu0 0
    %135 = vmatprep.subr.bf16.mxu0 0
    %136 = vmatpush1.bf16.msra.mxu0 0
    %137 = vmatprep.subr.bf16.mxu0 0
    %138 = vmatpush1.bf16.msra.mxu0 0
    %139 = vmatprep.subr.bf16.mxu0 0
    %140 = vmatpush1.bf16.msra.mxu0 0
    %141 = vmatprep.subr.bf16.mxu0 0
    %142 = vmatpush1.bf16.msra.mxu0 0
    %143 = vmatprep.subr.bf16.mxu0 0
    %144 = vmatpush1.bf16.msra.mxu0 0
    %145 = vmatprep.subr.bf16.mxu0 0
    %146 = vmatpush1.bf16.msra.mxu0 0
    %147 = vmatprep.subr.bf16.mxu0 0
    %148 = vmatpush1.bf16.msra.mxu0 0
    %149 = vmatprep.subr.bf16.mxu0 0
    %150 = vmatpush1.bf16.msra.mxu0 0
    %151 = vmatprep.mubr.bf16.mxu0 0
    %152 = vmatmul.mubr.bf16.gmra.mrb[0].mxu0 %v96
    %v153 = vpop.f32.mrb[0].mxu0
    %v154 = vadd.f32 0.0, %v153
    %v155 = vpop.f32.mrb[0].mxu0
    %v156 = vpop.f32.mrb[0].mxu0
    %v157 = vadd.f32 0.0, %v156
    %v158 = vpop.f32.mrb[0].mxu0
    %159 = vmatprep.mubr.bf16.mxu0 0
    %160 = vmatmul.mubr.bf16.gmra.mrb[0].mxu0 %v99
    %v161 = vpop.f32.mrb[0].mxu0
    %v162 = vadd.f32 0.0, %v161
    %v163 = vpop.f32.mrb[0].mxu0
    %v164 = vpop.f32.mrb[0].mxu0
    %v165 = vadd.f32 0.0, %v164
    %v166 = vpop.f32.mrb[0].mxu0
    %167 = vmatprep.mubr.bf16.mxu0 0
    %168 = vmatmul.mubr.bf16.gmra.mrb[0].mxu0 %v102
    %v169 = vpop.f32.mrb[0].mxu0
    %v170 = vadd.f32 0.0, %v169
    %v171 = vpop.f32.mrb[0].mxu0
    %v172 = vpop.f32.mrb[0].mxu0
    %v173 = vadd.f32 0.0, %v172
    %v174 = vpop.f32.mrb[0].mxu0
    %175 = vmatprep.mubr.bf16.mxu0 0
    %176 = vmatmul.mubr.bf16.gmra.mrb[0].mxu0 %v105
    %v177 = vpop.f32.mrb[0].mxu0
    %v178 = vadd.f32 0.0, %v177
    %v179 = vpop.f32.mrb[0].mxu0
    %v180 = vpop.f32.mrb[0].mxu0
    %v181 = vadd.f32 0.0, %v180
    %v182 = vpop.f32.mrb[0].mxu0
    %183 = vmatprep.mubr.bf16.mxu0 0
    %184 = vmatmul.mubr.bf16.gmra.mrb[0].mxu0 %v108
    %v185 = vpop.f32.mrb[0].mxu0
    %v186 = vadd.f32 0.0, %v185
    %v187 = vpop.f32.mrb[0].mxu0
    %v188 = vpop.f32.mrb[0].mxu0
    %v189 = vadd.f32 0.0, %v188
    %v190 = vpop.f32.mrb[0].mxu0
    %191 = vmatprep.mubr.bf16.mxu0 0
    %192 = vmatmul.mubr.bf16.gmra.mrb[0].mxu0 %v111
    %v193 = vpop.f32.mrb[0].mxu0
    %v194 = vadd.f32 0.0, %v193
    %v195 = vpop.f32.mrb[0].mxu0
    %v196 = vpop.f32.mrb[0].mxu0
    %v197 = vadd.f32 0.0, %v196
    %v198 = vpop.f32.mrb[0].mxu0
    %199 = vmatprep.mubr.bf16.mxu0 0
    %200 = vmatmul.mubr.bf16.gmra.mrb[0].mxu0 %v114
    %v201 = vpop.f32.mrb[0].mxu0
    %v202 = vadd.f32 0.0, %v201
    %v203 = vpop.f32.mrb[0].mxu0
    %v204 = vpop.f32.mrb[0].mxu0
    %v205 = vadd.f32 0.0, %v204
    %v206 = vpop.f32.mrb[0].mxu0
    %207 = vmatprep.mubr.bf16.mxu0 0
    %208 = vmatmul.mubr.bf16.gmra.mrb[0].mxu0 %v117
    %v209 = vpop.f32.mrb[0].mxu0
    %v210 = vadd.f32 0.0, %v209
    %v211 = vpop.f32.mrb[0].mxu0
    %v212 = vpop.f32.mrb[0].mxu0
    %v213 = vadd.f32 0.0, %v212
    %v214 = vpop.f32.mrb[0].mxu0
    %215 = vdwg.mxu0
    %v216 = vpack.c.bf16 %v157, %v154
    %v217 = vpack.c.bf16 %v165, %v162
    %v218 = vpack.c.bf16 %v173, %v170
    %v219 = vpack.c.bf16 %v181, %v178
    %v220 = vpack.c.bf16 %v189, %v186
    %v221 = vpack.c.bf16 %v197, %v194
    %v222 = vpack.c.bf16 %v205, %v202
    %v223 = vpack.c.bf16 %v213, %v210
    %vm224 = vcmask 64512
    %225 = vst.msk [vmem:[#allocation2] sm:$0xff] %vm224, %v216
    %227 = vrot.lane.b32.xlu0 %v217, 8
    %v228 = vpop.permute.xlu0 %227
    %vm230 = vcmask 130112
    %231 = vst.msk [vmem:[#allocation2] sm:$0xff] %vm230, %v228
    %233 = vrot.lane.b32.xlu0 %v218, 16
    %v234 = vpop.permute.xlu0 %233
    %vm236 = vcmask 195712
    %237 = vst.msk [vmem:[#allocation2] sm:$0xff] %vm236, %v234
    %239 = vrot.lane.b32.xlu0 %v219, 24
    %v240 = vpop.permute.xlu0 %239
    %vm242 = vcmask 261312
    %243 = vst.msk [vmem:[#allocation2] sm:$0xff] %vm242, %v240
    %245 = vrot.lane.b32.xlu0 %v220, 32
    %v246 = vpop.permute.xlu0 %245
    %vm248 = vcmask 326912
    %249 = vst.msk [vmem:[#allocation2] sm:$0xff] %vm248, %v246
    %251 = vrot.lane.b32.xlu0 %v221, 40
    %v252 = vpop.permute.xlu0 %251
    %vm254 = vcmask 392512
    %255 = vst.msk [vmem:[#allocation2] sm:$0xff] %vm254, %v252
    %257 = vrot.lane.b32.xlu0 %v222, 48
    %v258 = vpop.permute.xlu0 %257
    %vm260 = vcmask 458112
    %261 = vst.msk [vmem:[#allocation2] sm:$0xff] %vm260, %v258
    %263 = vrot.lane.b32.xlu0 %v223, 56
    %v264 = vpop.permute.xlu0 %263
    %vm266 = vcmask 523712
    %267 = vst.msk [vmem:[#allocation2] sm:$0xff] %vm266, %v264
    %v268 = vld [vmem:[%s2] sm:$0xf]
    %v269 = vld [vmem:[#allocation2] sm:$0xff]
    %v271 = vsel %vm94, %v268, 0
    %273 = vmatprep.subr.bf16.mxu0 0
    %274 = vmatpush1.bf16.msra.mxu0 %v269
    %275 = vmatprep.subr.bf16.mxu0 0
    %276 = vmatpush1.bf16.msra.mxu0 0
    %277 = vmatprep.subr.bf16.mxu0 0
    %278 = vmatpush1.bf16.msra.mxu0 0
    %279 = vmatprep.subr.bf16.mxu0 0
    %280 = vmatpush1.bf16.msra.mxu0 0
    %281 = vmatprep.subr.bf16.mxu0 0
    %282 = vmatpush1.bf16.msra.mxu0 0
    %283 = vmatprep.subr.bf16.mxu0 0
    %284 = vmatpush1.bf16.msra.mxu0 0
    %285 = vmatprep.subr.bf16.mxu0 0
    %286 = vmatpush1.bf16.msra.mxu0 0
    %287 = vmatprep.subr.bf16.mxu0 0
    %288 = vmatpush1.bf16.msra.mxu0 0
    %289 = vmatprep.subr.bf16.mxu0 0
    %290 = vmatpush1.bf16.msra.mxu0 0
    %291 = vmatprep.subr.bf16.mxu0 0
    %292 = vmatpush1.bf16.msra.mxu0 0
    %293 = vmatprep.subr.bf16.mxu0 0
    %294 = vmatpush1.bf16.msra.mxu0 0
    %295 = vmatprep.subr.bf16.mxu0 0
    %296 = vmatpush1.bf16.msra.mxu0 0
    %297 = vmatprep.subr.bf16.mxu0 0
    %298 = vmatpush1.bf16.msra.mxu0 0
    %299 = vmatprep.subr.bf16.mxu0 0
    %300 = vmatpush1.bf16.msra.mxu0 0
    %301 = vmatprep.subr.bf16.mxu0 0
    %302 = vmatpush1.bf16.msra.mxu0 0
    %303 = vmatprep.subr.bf16.mxu0 0
    %304 = vmatpush1.bf16.msra.mxu0 0
    %305 = vmatprep.mubr.bf16.mxu0 0
    %306 = vmatmul.mubr.bf16.gmra.mrb[0].mxu0 %v271
    %v307 = vpop.f32.mrb[0].mxu0
    %v308 = vadd.f32 0.0, %v307
    %v309 = vpop.f32.mrb[0].mxu0
    %v310 = vpop.f32.mrb[0].mxu0
    %v311 = vpop.f32.mrb[0].mxu0
    %312 = vdwg.mxu0
    %vm313 = vcmask 523264
    %314 = vst.msk [vmem:[#allocation6] sm:$0xff] %vm313, %v308
    // Predicated region
    $region18: #{tpu_custom_call.1} parent=1 // pred_check
      _
    $region19: #{tpu_custom_call.1} parent=1 // pred_check_branch
      %316 = sbr.rel (0) target = $region21
    $region20: #{tpu_custom_call.1} parent=1 // pred_region
      %s318 = ssub.s32 128, 128
      %319 = vsyncadd [#allocation5], %s318
      %s321 = sshll.u32 [#allocation6], 4
      %s322 = int_to_ptr.vmem [resolvable:$true] %s321
      %324 = dma.vmem_to_hbm [thread:$0]  %s322, 128, %s3, [#allocation5]
    $region21: #{tpu_custom_call.1} parent=1 // pred_fallthru
      _
    // Predicated region
    $region22: #{tpu_custom_call.1} parent=1 // pred_check
      _
    $region23: #{tpu_custom_call.1} parent=1 // pred_check_branch
      %326 = sbr.rel (0) target = $region25
    $region24: #{tpu_custom_call.1} parent=1 // pred_region
      %327 = dma.done [#allocation5], 128
    $region25: #{tpu_custom_call.1} parent=1 // pred_fallthru
      _
    %328 = vsyncpa [#allocation4], 1
    %329 = vsyncpa [#allocation5], 1

</llo_original>
